<compile_context>
chip_gen: v5e
topology: v5e:2x2
jax: 0.10.0
libtpu: 0.0.40
codegen_flags: <defaults>
</compile_context>

<pallas_src>
import functools

import jax
import jax.numpy as jnp
from jax.experimental import pallas as pl
from jax.experimental.pallas import tpu as pltpu


def _bilinear_matrix(out_size, in_size):
    """(out_size, in_size) interpolation matrix, PyTorch bilinear, align_corners=False."""
    scale = in_size / out_size
    dst = jnp.arange(out_size, dtype=jnp.float32)
    src = (dst + 0.5) * scale - 0.5
    src = jnp.clip(src, 0.0, in_size - 1)
    lo = jnp.floor(src).astype(jnp.int32)
    hi = jnp.minimum(lo + 1, in_size - 1)
    w_hi = src - lo.astype(jnp.float32)
    w_lo = 1.0 - w_hi
    rows = jnp.arange(out_size)
    m = jnp.zeros((out_size, in_size), jnp.float32)
    m = m.at[rows, lo].add(w_lo)
    m = m.at[rows, hi].add(w_hi)
    return m


def _shift_cols(a, s):
    """Columns shifted right by s with zero fill: out[:, j] = a[:, j - s] (else 0)."""
    if s == 0:
        return a
    n = a.shape[1]
    out = jnp.zeros_like(a)
    if s > 0:
        return out.at[:, s:].set(a[:, :n - s])
    return out.at[:, :n + s].set(a[:, -s:])


def _seg_head_kernel(x_ref, bt_ref, m_ref, bias_ref, o_ref, *, H, K, Cin, NB):
    # x_ref:    (1, NB*Cin*H, W)        NB batch elements, channel-major, (n, ci, h) merged on sublanes
    # bt_ref:   (K, W, OW)              per horizontal tap: (A_W composed with shift+pad)^T
    # m_ref:    (Cout*OH, K*Cin*H)      vertical taps x H-upsample x conv weights, pre-folded on host
    # bias_ref: (Cout*OH, 1)            conv bias, repeated over OH rows
    # o_ref:    (1, NB*Cout*OH, OW)     lane-contiguous output slab (NCHW reshape done in wrapper)
    xf = x_ref[0]                                                   # (NB*Cin*H, W)
    rows = Cin * H

    # Stage 1 (MXU, contraction on the lane axis W): horizontal tap shift + W-upsample.
    r = [jnp.dot(xf, bt_ref[kw], preferred_element_type=jnp.float32) for kw in range(K)]

    m = m_ref[...]                                                  # (Cout*OH, K*Cin*H)
    bias = bias_ref[...]                                            # (Cout*OH, 1)

    # Stage 2 (MXU): one (Cout*OH, K*Cin*H) @ (K*Cin*H, OW) matmul per batch element.
    outs = []
    for n in range(NB):
        # Sublane concat at tile-aligned (multiple-of-8) row boundaries -> cheap.
        rcat = jnp.concatenate([rk[n * rows:(n + 1) * rows, :] for rk in r], axis=0)
        outs.append(jnp.dot(m, rcat, preferred_element_type=jnp.float32) + bias)
    out = outs[0] if NB == 1 else jnp.concatenate(outs, axis=0)     # (NB*Cout*OH, OW)
    o_ref[0] = out.astype(o_ref.dtype)                              # single lane-dense slab store


def _batch_per_step(n):
    """Dual-TC chips (v4/v5p/v7x): 1 batch element per grid step -> 'parallel' shards across cores.
    Single-TC chips (v5e/v6e): merge the whole batch into one step (no per-step overhead,
    full MXU row fill). Unknown backends default to the portable grid=(N,) path."""
    try:
        kind = jax.devices()[0].device_kind.lower()
    except Exception:
        return 1
    if any(t in kind for t in ("v7", "v4", "v5p")):
        return 1
    if any(t in kind for t in ("v5", "v6")):   # v5e ("v5 lite"), v6e
        return n
    return 1


def segmentation_head(x_nchw, weight_oihw, bias, out_size, kernel_size=3):
    """x_nchw: (N, Cin, H, W) f32; weight_oihw: (Cout, Cin, K, K) (PyTorch layout); bias: (Cout,).
    Returns (N, Cout, OH, OW): Conv2d(k, padding=k//2) followed by bilinear upsample to out_size."""
    N, Cin, H, W = x_nchw.shape
    K = kernel_size
    pad = K // 2
    OH, OW = out_size
    Cout = weight_oihw.shape[0]

    NB = _batch_per_step(N)          # batch elements per grid step (1 or N)
    G = N // NB                      # grid steps

    # NCHW stays NCHW: (N, Cin, H, W) -> (G, NB*Cin*H, W) is a free, contiguous reshape.
    x_g = x_nchw.reshape(G, NB * Cin * H, W).astype(jnp.float32)

    # Bilinear interpolation matrices pre-composed with the conv tap shifts and zero padding.
    a_h = _bilinear_matrix(OH, H)
    a_w = _bilinear_matrix(OW, W)
    ch = jnp.stack([_shift_cols(a_h, kh - pad) for kh in range(K)], axis=0)     # (K, OH, H)
    bt = jnp.stack([_shift_cols(a_w, kw - pad).T for kw in range(K)], axis=0)   # (K, W, OW)

    # Fold conv weights + vertical taps + H-upsample into one matrix:
    #   M[co*OH + p, (kw*Cin + ci)*H + h] = sum_kh w[kh, kw, ci, co] * CH_kh[p, h]
    w_t = jnp.transpose(weight_oihw, (2, 3, 1, 0)).astype(jnp.float32)          # (K, K, Cin, Cout)
    m_mat = jnp.einsum('abic,aph->cpbih', w_t, ch).reshape(Cout * OH, K * Cin * H)

    # Bias (bilinear rows sum to 1, so it passes through the upsample unchanged).
    bias_col = jnp.repeat(bias.astype(jnp.float32), OH)[:, None]                # (Cout*OH, 1)

    kernel = functools.partial(_seg_head_kernel, H=H, K=K, Cin=Cin, NB=NB)

    out_flat = pl.pallas_call(
        kernel,
        out_shape=jax.ShapeDtypeStruct((G, NB * Cout * OH, OW), jnp.float32),
        grid_spec=pltpu.PrefetchScalarGridSpec(
            num_scalar_prefetch=0,
            grid=(G,),
            in_specs=[
                pl.BlockSpec((1, NB * Cin * H, W), lambda g: (g, 0, 0)),
                pl.BlockSpec((K, W, OW), lambda g: (0, 0, 0)),
                pl.BlockSpec((Cout * OH, K * Cin * H), lambda g: (0, 0)),
                pl.BlockSpec((Cout * OH, 1), lambda g: (0, 0)),
            ],
            out_specs=pl.BlockSpec((1, NB * Cout * OH, OW), lambda g: (g, 0, 0)),
        ),
        compiler_params=pltpu.CompilerParams(dimension_semantics=("parallel",)),
    )(x_g, bt, m_mat, bias_col)

    # Free, contiguous reshape back to NCHW.
    return out_flat.reshape(N, Cout, OH, OW)


def _reference(x_nchw, weight_oihw, bias, out_size):
    """Pure-JAX reference: Conv2d('SAME', NCHW/OIHW) + bilinear upsample via interp matrices."""
    conv = jax.lax.conv_general_dilated(
        x_nchw, weight_oihw, window_strides=(1, 1), padding='SAME',
        dimension_numbers=('NCHW', 'OIHW', 'NCHW'))
    conv = conv + bias[None, :, None, None]
    H, W = x_nchw.shape[2], x_nchw.shape[3]
    a_h = _bilinear_matrix(out_size[0], H)
    a_w = _bilinear_matrix(out_size[1], W)
    return jnp.einsum('ph,nchw,qw->ncpq', a_h, conv, a_w)


if __name__ == "__main__":
    # Module config (small shapes): in_channels=4, out_channels=3, size=(32, 32), kernel_size=3
    N, Cin, H, W = 2, 4, 16, 16
    Cout = 3
    SIZE = (32, 32)

    key = jax.random.PRNGKey(0)
    kx, kw_, kb = jax.random.split(key, 3)
    x = jax.random.normal(kx, (N, Cin, H, W), jnp.float32)
    weight = 0.1 * jax.random.normal(kw_, (Cout, Cin, 3, 3), jnp.float32)   # PyTorch OIHW layout
    bias = 0.1 * jax.random.normal(kb, (Cout,), jnp.float32)

    out = segmentation_head(x, weight, bias, SIZE, kernel_size=3)
    out = jax.block_until_ready(out)

    ref = _reference(x, weight, bias, SIZE)
    assert out.shape == (N, Cout, SIZE[0], SIZE[1]), out.shape
    max_err = float(jnp.max(jnp.abs(out - ref)))
    assert jnp.allclose(out, ref, rtol=1e-4, atol=1e-4), max_err

    print("KERNEL_OK")
</pallas_src>

<mosaic_0001>
module attributes {stable_mosaic.version = 11 : i64} {
  func.func @_seg_head_kernel(%arg0: i32, %arg1: memref<1x64x16xf32, #tpu.memory_space<vmem>>, %arg2: memref<3x16x32xf32, #tpu.memory_space<vmem>>, %arg3: memref<96x192xf32, #tpu.memory_space<vmem>>, %arg4: memref<96x1xf32, #tpu.memory_space<vmem>>, %arg5: memref<1x96x32xf32, #tpu.memory_space<vmem>>) attributes {dimension_semantics = [#tpu.dimension_semantics<parallel>], iteration_bounds = array<i64: 2>, scalar_prefetch = 0 : i64, scratch_operands = 0 : i64, tpu.core_type = #tpu.core_type<tc>, window_params = [{transform_indices = @transform_0, window_bounds = array<i64: 1, 64, 16>}, {pipeline_mode = #tpu.pipeline_mode<synchronous>, transform_indices = @transform_1, window_bounds = array<i64: 3, 16, 32>}, {pipeline_mode = #tpu.pipeline_mode<synchronous>, transform_indices = @transform_2, window_bounds = array<i64: 96, 192>}, {pipeline_mode = #tpu.pipeline_mode<synchronous>, transform_indices = @transform_3, window_bounds = array<i64: 96, 1>}, {transform_indices = @transform_4, window_bounds = array<i64: 1, 96, 32>}]} {
    %c0 = arith.constant 0 : index
    %c0_0 = arith.constant 0 : index
    %c0_1 = arith.constant 0 : index
    %0 = vector.load %arg1[%c0, %c0_0, %c0_1] : memref<1x64x16xf32, #tpu.memory_space<vmem>>, vector<1x64x16xf32>
    %1 = vector.shape_cast %0 : vector<1x64x16xf32> to vector<64x16xf32>
    %c0_2 = arith.constant 0 : index
    %c0_3 = arith.constant 0 : index
    %c0_4 = arith.constant 0 : index
    %2 = vector.load %arg2[%c0_2, %c0_3, %c0_4] : memref<3x16x32xf32, #tpu.memory_space<vmem>>, vector<1x16x32xf32>
    %3 = vector.shape_cast %2 : vector<1x16x32xf32> to vector<16x32xf32>
    %cst = arith.constant dense<0.000000e+00> : vector<64x32xf32>
    %4 = tpu.matmul %1, %3, %cst {dimension_numbers = #tpu.dot_dimension_numbers<[1], [0], [0], [1], [0, 0, 1, 1], [], []>} : vector<64x16xf32>, vector<16x32xf32>, vector<64x32xf32> -> vector<64x32xf32>
    %c1 = arith.constant 1 : index
    %c0_5 = arith.constant 0 : index
    %c0_6 = arith.constant 0 : index
    %5 = vector.load %arg2[%c1, %c0_5, %c0_6] : memref<3x16x32xf32, #tpu.memory_space<vmem>>, vector<1x16x32xf32>
    %6 = vector.shape_cast %5 : vector<1x16x32xf32> to vector<16x32xf32>
    %cst_7 = arith.constant dense<0.000000e+00> : vector<64x32xf32>
    %7 = tpu.matmul %1, %6, %cst_7 {dimension_numbers = #tpu.dot_dimension_numbers<[1], [0], [0], [1], [0, 0, 1, 1], [], []>} : vector<64x16xf32>, vector<16x32xf32>, vector<64x32xf32> -> vector<64x32xf32>
    %c2 = arith.constant 2 : index
    %c0_8 = arith.constant 0 : index
    %c0_9 = arith.constant 0 : index
    %8 = vector.load %arg2[%c2, %c0_8, %c0_9] : memref<3x16x32xf32, #tpu.memory_space<vmem>>, vector<1x16x32xf32>
    %9 = vector.shape_cast %8 : vector<1x16x32xf32> to vector<16x32xf32>
    %cst_10 = arith.constant dense<0.000000e+00> : vector<64x32xf32>
    %10 = tpu.matmul %1, %9, %cst_10 {dimension_numbers = #tpu.dot_dimension_numbers<[1], [0], [0], [1], [0, 0, 1, 1], [], []>} : vector<64x16xf32>, vector<16x32xf32>, vector<64x32xf32> -> vector<64x32xf32>
    %c0_11 = arith.constant 0 : index
    %c0_12 = arith.constant 0 : index
    %11 = vector.load %arg3[%c0_11, %c0_12] : memref<96x192xf32, #tpu.memory_space<vmem>>, vector<96x192xf32>
    %c0_13 = arith.constant 0 : index
    %c0_14 = arith.constant 0 : index
    %12 = vector.load %arg4[%c0_13, %c0_14] : memref<96x1xf32, #tpu.memory_space<vmem>>, vector<96x1xf32>
    %13 = tpu.concatenate %4, %7, %10 in 0 : vector<64x32xf32>, vector<64x32xf32>, vector<64x32xf32> -> vector<192x32xf32>
    %cst_15 = arith.constant dense<0.000000e+00> : vector<96x32xf32>
    %14 = tpu.matmul %11, %13, %cst_15 {dimension_numbers = #tpu.dot_dimension_numbers<[1], [0], [0], [1], [0, 0, 1, 1], [], []>} : vector<96x192xf32>, vector<192x32xf32>, vector<96x32xf32> -> vector<96x32xf32>
    %15 = vector.broadcast %12 : vector<96x1xf32> to vector<96x32xf32>
    %16 = arith.addf %14, %15 : vector<96x32xf32>
    %c0_16 = arith.constant 0 : index
    %c0_17 = arith.constant 0 : index
    %c0_18 = arith.constant 0 : index
    %17 = vector.load %arg5[%c0_16, %c0_17, %c0_18] : memref<1x96x32xf32, #tpu.memory_space<vmem>>, vector<1x96x32xf32>
    %18 = vector.shape_cast %17 : vector<1x96x32xf32> to vector<96x32xf32>
    %19 = vector.shape_cast %16 : vector<96x32xf32> to vector<1x96x32xf32>
    tpu.vector_store %arg5[%c0_16, %c0_17, %c0_18], %19 {strides = array<i32>} : memref<1x96x32xf32, #tpu.memory_space<vmem>>, vector<1x96x32xf32>,
    return
  }
  func.func @transform_0(%arg0: i32) -> (i32, i32, i32) {
    %c0_i32 = arith.constant 0 : i32
    %c0_i32_0 = arith.constant 0 : i32
    %c0_i32_1 = arith.constant 0 : i32
    return %arg0, %c0_i32, %c0_i32_0 : i32, i32, i32
  }
  func.func @transform_1(%arg0: i32) -> (i32, i32, i32) {
    %c0_i32 = arith.constant 0 : i32
    %c0_i32_0 = arith.constant 0 : i32
    %c0_i32_1 = arith.constant 0 : i32
    %c0_i32_2 = arith.constant 0 : i32
    return %c0_i32, %c0_i32_0, %c0_i32_1 : i32, i32, i32
  }
  func.func @transform_2(%arg0: i32) -> (i32, i32) {
    %c0_i32 = arith.constant 0 : i32
    %c0_i32_0 = arith.constant 0 : i32
    %c0_i32_1 = arith.constant 0 : i32
    return %c0_i32, %c0_i32_0 : i32, i32
  }
  func.func @transform_3(%arg0: i32) -> (i32, i32) {
    %c0_i32 = arith.constant 0 : i32
    %c0_i32_0 = arith.constant 0 : i32
    %c0_i32_1 = arith.constant 0 : i32
    return %c0_i32, %c0_i32_0 : i32, i32
  }
  func.func @transform_4(%arg0: i32) -> (i32, i32, i32) {
    %c0_i32 = arith.constant 0 : i32
    %c0_i32_0 = arith.constant 0 : i32
    %c0_i32_1 = arith.constant 0 : i32
    return %arg0, %c0_i32, %c0_i32_0 : i32, i32, i32
  }
}

</mosaic_0001>

<llo_original>
// kernel: tpu_custom_call.1
$region0: #{tpu_custom_call.1}
  #allocation0 [shape = 'u32[]', space=smem, size = 0x4, offset = 0x4, fixed_abs, tag = 'smem constant byte address 0x4 - core index']
  #allocation1 [shape = 'u32[72,128]{1,0:T(1,128)}', space=vmem, size = 0x9000, scoped, tag = 'internal scratch']
  %s0 = inlined_call_operand.vmem [shape: f32[2,64,16], index: 0, kind: input, shape index: {}]
  %s1 = inlined_call_operand.hbm [shape: f32[3,16,32], index: 1, kind: input, shape index: {}]
  %s2 = inlined_call_operand.vmem [shape: f32[96,192], index: 2, kind: input, shape index: {}]
  %s3 = inlined_call_operand.vmem [shape: f32[96,1], index: 3, kind: input, shape index: {}]
  %s4 = inlined_call_operand.vmem [shape: f32[2,96,32], index: 4, kind: output, shape index: {}]
  %s5 = sld [smem:[#allocation0]]
  $region53: #{tpu_custom_call.1} parent=0
    _
  %s7 = ssub.s32 1, %s5
  %s8 = scalar_select 0, %s7, %s5
  $region1: #{tpu_custom_call.1} parent=0
    #allocation2 [shape = 'u8[24576]{0}', space=vmem, size = 0x6000, scoped, tag = 'input window, operand 1, single buffered']
    #allocation3 [shape = 's32[2]{0}', space=sflag, size = 0x8, scoped, tag = 'scoped memory for tpu_custom_call.1']
    %9 = vsyncpa [#allocation3], 0
    loop: start=0, step=1, limit=4
    $region2: #{tpu_custom_call.1} parent=1 // loop_pre_header
      _
    $region3: #{tpu_custom_call.1} parent=1 // loop_header
      %s11 = sphi 0, %s15
      %p12 = scmp.ge.s32.totalorder %s11, 4
      %s21 = sphi 0, %s23
      %s24 = sphi 0, %s21
      %s25 = sphi 0, %s24
      %s41 = sphi 0, %s25
      %s45 = sphi 0, %s45
      %s47 = sphi 0, %s45
      %s48 = sphi 0, %s47
      %s62 = sphi 0, %s48
      %s66 = sphi 0, %s66
      %s68 = sphi 0, %s66
      %s69 = sphi 0, %s68
      %s83 = sphi 0, %s69
      %s87 = sphi 0, %s87
      %s89 = sphi 0, %s87
      %s90 = sphi 0, %s89
      %s104 = sphi 0, %s90
      %s110 = sphi 0, %s112
      %s113 = sphi 0, %s110
      %s114 = sphi 0, %s113
      %s130 = sphi 0, %s114
    $region4: #{tpu_custom_call.1} parent=1 // loop_header_branch
      %14 = sbr.rel (%p12) target = $region8
    $region5: #{tpu_custom_call.1} parent=1 // loop_body
      %s16 = ssub.s32 %s11, 1
      %s17 = ssub.s32 %s11, 2
      %s18 = sadd.s32 %s11, 1
      %s19 = ssub.s32 %s11, %s18
      %p20 = scmp.eq.s32.totalorder %s19, 0
      %s22 = sadd.s32 %s21, 1
      %s23 = scalar_select %p20, %s21, %s22
      %p26 = pneg %p20
      %p27 = scmp.eq.s32.totalorder %s11, 1
      %p28 = por %p26, %p27
      %p29 = scmp.ne.s32.totalorder %s21, %s24
      %p30 = scmp.eq.s32.totalorder %s11, 0
      %p31 = por %p29, %p30
      %p32 = scmp.ne.s32.totalorder %s21, %s24
      %p33 = scmp.eq.s32.totalorder %s16, 1
      %p34 = por %p32, %p33
      %p35 = scmp.ne.s32.totalorder %s24, %s25
      %p36 = scmp.eq.s32.totalorder %s16, 0
      %p37 = por %p35, %p36
      %p38 = scmp.ne.s32.totalorder %s24, %s25
      %p39 = scmp.eq.s32.totalorder %s17, 1
      %p40 = por %p38, %p39
      %p42 = scmp.ne.s32.totalorder %s25, %s41
      %p43 = scmp.eq.s32.totalorder %s17, 0
      %p44 = por %p42, %p43
      %s46 = sadd.s32 %s45, 1
      %p49 = scmp.eq.s32.totalorder %s11, 1
      %p50 = scmp.ne.s32.totalorder %s45, %s47
      %p51 = scmp.eq.s32.totalorder %s11, 0
      %p52 = por %p50, %p51
      %p53 = scmp.ne.s32.totalorder %s45, %s47
      %p54 = scmp.eq.s32.totalorder %s16, 1
      %p55 = por %p53, %p54
      %p56 = scmp.ne.s32.totalorder %s47, %s48
      %p57 = scmp.eq.s32.totalorder %s16, 0
      %p58 = por %p56, %p57
      %p59 = scmp.ne.s32.totalorder %s47, %s48
      %p60 = scmp.eq.s32.totalorder %s17, 1
      %p61 = por %p59, %p60
      %p63 = scmp.ne.s32.totalorder %s48, %s62
      %p64 = scmp.eq.s32.totalorder %s17, 0
      %p65 = por %p63, %p64
      %s67 = sadd.s32 %s66, 1
      %p70 = scmp.eq.s32.totalorder %s11, 1
      %p71 = scmp.ne.s32.totalorder %s66, %s68
      %p72 = scmp.eq.s32.totalorder %s11, 0
      %p73 = por %p71, %p72
      %p74 = scmp.ne.s32.totalorder %s66, %s68
      %p75 = scmp.eq.s32.totalorder %s16, 1
      %p76 = por %p74, %p75
      %p77 = scmp.ne.s32.totalorder %s68, %s69
      %p78 = scmp.eq.s32.totalorder %s16, 0
      %p79 = por %p77, %p78
      %p80 = scmp.ne.s32.totalorder %s68, %s69
      %p81 = scmp.eq.s32.totalorder %s17, 1
      %p82 = por %p80, %p81
      %p84 = scmp.ne.s32.totalorder %s69, %s83
      %p85 = scmp.eq.s32.totalorder %s17, 0
      %p86 = por %p84, %p85
      %s88 = sadd.s32 %s87, 1
      %p91 = scmp.eq.s32.totalorder %s11, 1
      %p92 = scmp.ne.s32.totalorder %s87, %s89
      %p93 = scmp.eq.s32.totalorder %s11, 0
      %p94 = por %p92, %p93
      %p95 = scmp.ne.s32.totalorder %s87, %s89
      %p96 = scmp.eq.s32.totalorder %s16, 1
      %p97 = por %p95, %p96
      %p98 = scmp.ne.s32.totalorder %s89, %s90
      %p99 = scmp.eq.s32.totalorder %s16, 0
      %p100 = por %p98, %p99
      %p101 = scmp.ne.s32.totalorder %s89, %s90
      %p102 = scmp.eq.s32.totalorder %s17, 1
      %p103 = por %p101, %p102
      %p105 = scmp.ne.s32.totalorder %s90, %s104
      %p106 = scmp.eq.s32.totalorder %s17, 0
      %p107 = por %p105, %p106
      %s108 = ssub.s32 %s11, %s18
      %p109 = scmp.eq.s32.totalorder %s108, 0
      %s111 = sadd.s32 %s110, 1
      %s112 = scalar_select %p109, %s110, %s111
      %p115 = pneg %p109
      %p116 = scmp.eq.s32.totalorder %s11, 1
      %p117 = por %p115, %p116
      %p118 = scmp.ne.s32.totalorder %s110, %s113
      %p119 = scmp.eq.s32.totalorder %s11, 0
      %p120 = por %p118, %p119
      %p121 = scmp.ne.s32.totalorder %s110, %s113
      %p122 = scmp.eq.s32.totalorder %s16, 1
      %p123 = por %p121, %p122
      %p124 = scmp.ne.s32.totalorder %s113, %s114
      %p125 = scmp.eq.s32.totalorder %s16, 0
      %p126 = por %p124, %p125
      %p127 = scmp.ne.s32.totalorder %s113, %s114
      %p128 = scmp.eq.s32.totalorder %s17, 1
      %p129 = por %p127, %p128
      %p131 = scmp.ne.s32.totalorder %s114, %s130
      %p132 = scmp.eq.s32.totalorder %s17, 0
      %p133 = por %p131, %p132
      %p134 = scmp.le.s32.totalorder 1, %s11
      %p135 = scmp.lt.s32.totalorder %s11, 3
      %p136 = pnand %p134, %p135
      %p137 = pneg %p136
      // Predicated region
      $region9: #{tpu_custom_call.1} parent=5 // pred_check
        _
      $region10: #{tpu_custom_call.1} parent=5 // pred_check_branch
        %139 = sbr.rel (%p136) target = $region12
      $region11: #{tpu_custom_call.1} parent=5 // pred_region
        %s140 = ssub.s32 %s11, 1
        // Predicated region
        $region13: #{tpu_custom_call.1} parent=11 // pred_check
          %p141 = pneg %p58
        $region14: #{tpu_custom_call.1} parent=11 // pred_check_branch
          %143 = sbr.rel (%p141) target = $region16
        $region15: #{tpu_custom_call.1} parent=11 // pred_region
          %145 = vsyncadd [#allocation3], 0
          %s146 = sshll.u32 %s1, 4
          %s147 = int_to_ptr.hbm [resolvable:$true] %s146
          %s148 = sshll.u32 [#allocation2], 4
          %s149 = int_to_ptr.vmem [resolvable:$true] %s148
          %154 = dma.hbm_to_vmem [thread:$0]  %s147, 768, %s149, [#allocation3], 128, 128, 8
        $region16: #{tpu_custom_call.1} parent=11 // pred_fallthru
          _
        // Predicated region
        $region17: #{tpu_custom_call.1} parent=11 // pred_check
          %p155 = pneg %p79
        $region18: #{tpu_custom_call.1} parent=11 // pred_check_branch
          %157 = sbr.rel (%p155) target = $region20
        $region19: #{tpu_custom_call.1} parent=11 // pred_region
          _
        $region20: #{tpu_custom_call.1} parent=11 // pred_fallthru
          _
        // Predicated region
        $region21: #{tpu_custom_call.1} parent=11 // pred_check
          %p158 = pneg %p100
        $region22: #{tpu_custom_call.1} parent=11 // pred_check_branch
          %160 = sbr.rel (%p158) target = $region24
        $region23: #{tpu_custom_call.1} parent=11 // pred_region
          _
        $region24: #{tpu_custom_call.1} parent=11 // pred_fallthru
          _
      $region12: #{tpu_custom_call.1} parent=5 // pred_fallthru
        _
      %p161 = scmp.lt.s32.totalorder %s11, 2
      // Predicated region
      $region25: #{tpu_custom_call.1} parent=5 // pred_check
        %p162 = pneg %p161
      $region26: #{tpu_custom_call.1} parent=5 // pred_check_branch
        %164 = sbr.rel (%p162) target = $region28
      $region27: #{tpu_custom_call.1} parent=5 // pred_region
        // Predicated region
        $region29: #{tpu_custom_call.1} parent=27 // pred_check
          %p165 = pneg %p31
        $region30: #{tpu_custom_call.1} parent=27 // pred_check_branch
          %167 = sbr.rel (%p165) target = $region32
        $region31: #{tpu_custom_call.1} parent=27 // pred_region
          %p168 = scmp.lt.s32.totalorder %s11, 1
          %s169 = scalar_select %p168, %s11, 1
          %s170 = smul.addr %s169, 8
          %s171 = smul.addr %s170, 8
          %s172 = scalar_lea.vmem %s0, %s171
        $region32: #{tpu_custom_call.1} parent=27 // pred_fallthru
          _
      $region28: #{tpu_custom_call.1} parent=5 // pred_fallthru
        _
      %p173 = scmp.le.s32.totalorder 1, %s11
      %p174 = scmp.lt.s32.totalorder %s11, 3
      %p175 = pnand %p173, %p174
      %p176 = pneg %p175
      // Predicated region
      $region33: #{tpu_custom_call.1} parent=5 // pred_check
        _
      $region34: #{tpu_custom_call.1} parent=5 // pred_check_branch
        %178 = sbr.rel (%p175) target = $region36
      $region35: #{tpu_custom_call.1} parent=5 // pred_region
        %s179 = ssub.s32 %s11, 1
        // Predicated region
        $region37: #{tpu_custom_call.1} parent=35 // pred_check
          %p180 = pneg %p58
        $region38: #{tpu_custom_call.1} parent=35 // pred_check_branch
          %182 = sbr.rel (%p180) target = $region40
        $region39: #{tpu_custom_call.1} parent=35 // pred_region
          %184 = dma.done [#allocation3], 768
        $region40: #{tpu_custom_call.1} parent=35 // pred_fallthru
          _
        %p185 = scmp.lt.s32.totalorder %s16, 1
        %s186 = scalar_select %p185, %s16, 1
        %s187 = smul.addr %s186, 8
        %s188 = smul.addr %s187, 8
        %s189 = scalar_lea.vmem %s0, %s188
        %p190 = pneg %p37
        %p191 = pneg %p34
        %p192 = pneg %p58
        %p193 = pneg %p55
        %p194 = pneg %p79
        %p195 = pneg %p76
        %p196 = pneg %p100
        %p197 = pneg %p97
        %p198 = pneg %p126
        %p199 = pneg %p123
        %p200 = scmp.lt.s32.totalorder %s16, 1
        %s201 = scalar_select %p200, %s16, 1
        %s202 = smul.addr %s201, 12
        %s203 = smul.addr %s202, 8
        %s204 = scalar_lea.vmem %s4, %s203
        %p205 = scmp.lt.s32.totalorder %s16, 1
        %s206 = scalar_select %p205, %s16, 1
        %s207 = smul.addr %s206, 8
        %s208 = smul.addr %s207, 8
        %s209 = scalar_lea.vmem %s0, %s208
        %p210 = scmp.lt.s32.totalorder %s16, 1
        %s211 = scalar_select %p210, %s16, 1
        %s212 = smul.addr %s211, 12
        %s213 = smul.addr %s212, 8
        %s214 = scalar_lea.vmem %s4, %s213
        %v215 = vld [vmem:[%s209] sm:$0xff]
        %v216 = vld [vmem:[%s209 + $0x8] sm:$0xff]
        %v217 = vld [vmem:[%s209 + $0x10] sm:$0xff]
        %v218 = vld [vmem:[%s209 + $0x18] sm:$0xff]
        %v219 = vld [vmem:[%s209 + $0x20] sm:$0xff]
        %v220 = vld [vmem:[%s209 + $0x28] sm:$0xff]
        %v221 = vld [vmem:[%s209 + $0x30] sm:$0xff]
        %v222 = vld [vmem:[%s209 + $0x38] sm:$0xff]
        %v223 = vld [vmem:[#allocation2] sm:$0xff]
        %v224 = vld [vmem:[#allocation2 + $0x8] sm:$0xff]
        %vm225 = vcmask 130048
        %v227 = vsel %vm225, %v215, 0
        %v230 = vsel %vm225, %v216, 0
        %v233 = vsel %vm225, %v217, 0
        %v236 = vsel %vm225, %v218, 0
        %v239 = vsel %vm225, %v219, 0
        %v242 = vsel %vm225, %v220, 0
        %v245 = vsel %vm225, %v221, 0
        %v248 = vsel %vm225, %v222, 0
        %250 = vmatpush.msra.mxu0 0.0
        %251 = vmatpush.msra.mxu0 0.0
        %252 = vmatpush.msra.mxu0 0.0
        %253 = vmatpush.msra.mxu0 0.0
        %254 = vmatpush.msra.mxu0 0.0
        %255 = vmatpush.msra.mxu0 0.0
        %256 = vmatpush.msra.mxu0 0.0
        %257 = vmatpush.msra.mxu0 0.0
        %258 = vmatpush.msra.mxu0 0.0
        %259 = vmatpush.msra.mxu0 0.0
        %260 = vmatpush.msra.mxu0 0.0
        %261 = vmatpush.msra.mxu0 0.0
        %262 = vmatpush.msra.mxu0 0.0
        %263 = vmatpush.msra.mxu0 0.0
        %264 = vmatpush.msra.mxu0 %v224
        %265 = vmatpush.msra.mxu0 %v223
        %266 = vmatmul.f32.gmra.mxu0 %v227
        %v267 = vpop.f32.mrf.mxu0
        %v268 = vadd.f32 0.0, %v267
        %269 = vmatmul.f32.gmra.mxu0 %v230
        %v270 = vpop.f32.mrf.mxu0
        %v271 = vadd.f32 0.0, %v270
        %272 = vmatmul.f32.gmra.mxu0 %v233
        %v273 = vpop.f32.mrf.mxu0
        %v274 = vadd.f32 0.0, %v273
        %275 = vmatmul.f32.gmra.mxu0 %v236
        %v276 = vpop.f32.mrf.mxu0
        %v277 = vadd.f32 0.0, %v276
        %278 = vmatmul.f32.gmra.mxu0 %v239
        %v279 = vpop.f32.mrf.mxu0
        %v280 = vadd.f32 0.0, %v279
        %281 = vmatmul.f32.gmra.mxu0 %v242
        %v282 = vpop.f32.mrf.mxu0
        %v283 = vadd.f32 0.0, %v282
        %284 = vmatmul.f32.gmra.mxu0 %v245
        %v285 = vpop.f32.mrf.mxu0
        %v286 = vadd.f32 0.0, %v285
        %287 = vmatmul.f32.gmra.mxu0 %v248
        %v288 = vpop.f32.mrf.mxu0
        %v289 = vadd.f32 0.0, %v288
        %290 = vdwg.mxu0
        %s291 = scalar_lea.vmem [#allocation2], 16
        %v292 = vld [vmem:[%s291] sm:$0xff]
        %v293 = vld [vmem:[%s291 + $0x8] sm:$0xff]
        %294 = vmatpush.msra.mxu0 0.0
        %295 = vmatpush.msra.mxu0 0.0
        %296 = vmatpush.msra.mxu0 0.0
        %297 = vmatpush.msra.mxu0 0.0
        %298 = vmatpush.msra.mxu0 0.0
        %299 = vmatpush.msra.mxu0 0.0
        %300 = vmatpush.msra.mxu0 0.0
        %301 = vmatpush.msra.mxu0 0.0
        %302 = vmatpush.msra.mxu0 0.0
        %303 = vmatpush.msra.mxu0 0.0
        %304 = vmatpush.msra.mxu0 0.0
        %305 = vmatpush.msra.mxu0 0.0
        %306 = vmatpush.msra.mxu0 0.0
        %307 = vmatpush.msra.mxu0 0.0
        %308 = vmatpush.msra.mxu0 %v293
        %309 = vmatpush.msra.mxu0 %v292
        %310 = vmatmul.f32.gmra.mxu0 %v227
        %v311 = vpop.f32.mrf.mxu0
        %v312 = vadd.f32 0.0, %v311
        %313 = vmatmul.f32.gmra.mxu0 %v230
        %v314 = vpop.f32.mrf.mxu0
        %v315 = vadd.f32 0.0, %v314
        %316 = vmatmul.f32.gmra.mxu0 %v233
        %v317 = vpop.f32.mrf.mxu0
        %v318 = vadd.f32 0.0, %v317
        %319 = vmatmul.f32.gmra.mxu0 %v236
        %v320 = vpop.f32.mrf.mxu0
        %v321 = vadd.f32 0.0, %v320
        %322 = vmatmul.f32.gmra.mxu0 %v239
        %v323 = vpop.f32.mrf.mxu0
        %v324 = vadd.f32 0.0, %v323
        %325 = vmatmul.f32.gmra.mxu0 %v242
        %v326 = vpop.f32.mrf.mxu0
        %v327 = vadd.f32 0.0, %v326
        %328 = vmatmul.f32.gmra.mxu0 %v245
        %v329 = vpop.f32.mrf.mxu0
        %v330 = vadd.f32 0.0, %v329
        %331 = vmatmul.f32.gmra.mxu0 %v248
        %v332 = vpop.f32.mrf.mxu0
        %v333 = vadd.f32 0.0, %v332
        %334 = vdwg.mxu0
        %s335 = scalar_lea.vmem [#allocation2], 32
        %v336 = vld [vmem:[%s335] sm:$0xff]
        %v337 = vld [vmem:[%s335 + $0x8] sm:$0xff]
        %338 = vmatpush.msra.mxu0 0.0
        %339 = vmatpush.msra.mxu0 0.0
        %340 = vmatpush.msra.mxu0 0.0
        %341 = vmatpush.msra.mxu0 0.0
        %342 = vmatpush.msra.mxu0 0.0
        %343 = vmatpush.msra.mxu0 0.0
        %344 = vmatpush.msra.mxu0 0.0
        %345 = vmatpush.msra.mxu0 0.0
        %346 = vmatpush.msra.mxu0 0.0
        %347 = vmatpush.msra.mxu0 0.0
        %348 = vmatpush.msra.mxu0 0.0
        %349 = vmatpush.msra.mxu0 0.0
        %350 = vmatpush.msra.mxu0 0.0
        %351 = vmatpush.msra.mxu0 0.0
        %352 = vmatpush.msra.mxu0 %v337
        %353 = vmatpush.msra.mxu0 %v336
        %354 = vmatmul.f32.gmra.mxu0 %v227
        %v355 = vpop.f32.mrf.mxu0
        %v356 = vadd.f32 0.0, %v355
        %357 = vmatmul.f32.gmra.mxu0 %v230
        %v358 = vpop.f32.mrf.mxu0
        %v359 = vadd.f32 0.0, %v358
        %360 = vmatmul.f32.gmra.mxu0 %v233
        %v361 = vpop.f32.mrf.mxu0
        %v362 = vadd.f32 0.0, %v361
        %363 = vmatmul.f32.gmra.mxu0 %v236
        %v364 = vpop.f32.mrf.mxu0
        %v365 = vadd.f32 0.0, %v364
        %366 = vmatmul.f32.gmra.mxu0 %v239
        %v367 = vpop.f32.mrf.mxu0
        %v368 = vadd.f32 0.0, %v367
        %369 = vmatmul.f32.gmra.mxu0 %v242
        %v370 = vpop.f32.mrf.mxu0
        %v371 = vadd.f32 0.0, %v370
        %372 = vmatmul.f32.gmra.mxu0 %v245
        %v373 = vpop.f32.mrf.mxu0
        %v374 = vadd.f32 0.0, %v373
        %375 = vmatmul.f32.gmra.mxu0 %v248
        %v376 = vpop.f32.mrf.mxu0
        %v377 = vadd.f32 0.0, %v376
        %378 = vdwg.mxu0
        %v379 = vld [vmem:[%s2] sm:$0xff]
        %v380 = vld [vmem:[%s2 + $0x8] sm:$0xff]
        %v381 = vld [vmem:[%s2 + $0x10] sm:$0xff]
        %v382 = vld [vmem:[%s2 + $0x18] sm:$0xff]
        %v383 = vld [vmem:[%s2 + $0x20] sm:$0xff]
        %v384 = vld [vmem:[%s2 + $0x28] sm:$0xff]
        %v385 = vld [vmem:[%s2 + $0x30] sm:$0xff]
        %v386 = vld [vmem:[%s2 + $0x38] sm:$0xff]
        %v387 = vld [vmem:[%s2 + $0x40] sm:$0xff]
        %v388 = vld [vmem:[%s2 + $0x48] sm:$0xff]
        %v389 = vld [vmem:[%s2 + $0x50] sm:$0xff]
        %v390 = vld [vmem:[%s2 + $0x58] sm:$0xff]
        %v391 = vld [vmem:[%s2 + $0x60] sm:$0xff]
        %v392 = vld [vmem:[%s2 + $0x68] sm:$0xff]
        %v393 = vld [vmem:[%s2 + $0x70] sm:$0xff]
        %v394 = vld [vmem:[%s2 + $0x78] sm:$0xff]
        %v395 = vld [vmem:[%s2 + $0x80] sm:$0xff]
        %v396 = vld [vmem:[%s2 + $0x88] sm:$0xff]
        %v397 = vld [vmem:[%s2 + $0x90] sm:$0xff]
        %v398 = vld [vmem:[%s2 + $0x98] sm:$0xff]
        %v399 = vld [vmem:[%s2 + $0xa0] sm:$0xff]
        %v400 = vld [vmem:[%s2 + $0xa8] sm:$0xff]
        %v401 = vld [vmem:[%s2 + $0xb0] sm:$0xff]
        %v402 = vld [vmem:[%s2 + $0xb8] sm:$0xff]
        %v403 = vld [vmem:[%s3] sm:$0xff]
        %v404 = vld [vmem:[%s3 + $0x8] sm:$0xff]
        %v405 = vld [vmem:[%s3 + $0x10] sm:$0xff]
        %v406 = vld [vmem:[%s3 + $0x18] sm:$0xff]
        %v407 = vld [vmem:[%s3 + $0x20] sm:$0xff]
        %v408 = vld [vmem:[%s3 + $0x28] sm:$0xff]
        %v409 = vld [vmem:[%s3 + $0x30] sm:$0xff]
        %v410 = vld [vmem:[%s3 + $0x38] sm:$0xff]
        %v411 = vld [vmem:[%s3 + $0x40] sm:$0xff]
        %v412 = vld [vmem:[%s3 + $0x48] sm:$0xff]
        %v413 = vld [vmem:[%s3 + $0x50] sm:$0xff]
        %v414 = vld [vmem:[%s3 + $0x58] sm:$0xff]
        %416 = vset.pattern.permute.xlu0 0
        %417 = vperm.xlu0 %416, %v403
        %v418 = vpop.permute.xlu0 %417
        %421 = vset.pattern.permute.xlu0 0
        %422 = vperm.xlu0 %421, %v404
        %v423 = vpop.permute.xlu0 %422
        %426 = vset.pattern.permute.xlu0 0
        %427 = vperm.xlu0 %426, %v405
        %v428 = vpop.permute.xlu0 %427
        %431 = vset.pattern.permute.xlu0 0
        %432 = vperm.xlu0 %431, %v406
        %v433 = vpop.permute.xlu0 %432
        %436 = vset.pattern.permute.xlu0 0
        %437 = vperm.xlu0 %436, %v407
        %v438 = vpop.permute.xlu0 %437
        %441 = vset.pattern.permute.xlu0 0
        %442 = vperm.xlu0 %441, %v408
        %v443 = vpop.permute.xlu0 %442
        %446 = vset.pattern.permute.xlu0 0
        %447 = vperm.xlu0 %446, %v409
        %v448 = vpop.permute.xlu0 %447
        %451 = vset.pattern.permute.xlu0 0
        %452 = vperm.xlu0 %451, %v410
        %v453 = vpop.permute.xlu0 %452
        %456 = vset.pattern.permute.xlu0 0
        %457 = vperm.xlu0 %456, %v411
        %v458 = vpop.permute.xlu0 %457
        %461 = vset.pattern.permute.xlu0 0
        %462 = vperm.xlu0 %461, %v412
        %v463 = vpop.permute.xlu0 %462
        %466 = vset.pattern.permute.xlu0 0
        %467 = vperm.xlu0 %466, %v413
        %v468 = vpop.permute.xlu0 %467
        %471 = vset.pattern.permute.xlu0 0
        %472 = vperm.xlu0 %471, %v414
        %v473 = vpop.permute.xlu0 %472
        %vm475 = vcmask 523264
        %v477 = vsel %vm475, %v380, 0
        %v480 = vsel %vm475, %v382, 0
        %v483 = vsel %vm475, %v384, 0
        %v486 = vsel %vm475, %v386, 0
        %v489 = vsel %vm475, %v388, 0
        %v492 = vsel %vm475, %v390, 0
        %v495 = vsel %vm475, %v392, 0
        %v498 = vsel %vm475, %v394, 0
        %v501 = vsel %vm475, %v396, 0
        %v504 = vsel %vm475, %v398, 0
        %v507 = vsel %vm475, %v400, 0
        %v510 = vsel %vm475, %v402, 0
        %512 = vmatpush.msra.mxu0 %v333
        %513 = vmatpush.msra.mxu0 %v330
        %514 = vmatpush.msra.mxu0 %v327
        %515 = vmatpush.msra.mxu0 %v324
        %516 = vmatpush.msra.mxu0 %v321
        %517 = vmatpush.msra.mxu0 %v318
        %518 = vmatpush.msra.mxu0 %v315
        %519 = vmatpush.msra.mxu0 %v312
        %520 = vmatpush.msra.mxu0 %v289
        %521 = vmatpush.msra.mxu0 %v286
        %522 = vmatpush.msra.mxu0 %v283
        %523 = vmatpush.msra.mxu0 %v280
        %524 = vmatpush.msra.mxu0 %v277
        %525 = vmatpush.msra.mxu0 %v274
        %526 = vmatpush.msra.mxu0 %v271
        %527 = vmatpush.msra.mxu0 %v268
        %528 = vmatmul.f32.gmra.mxu0 %v379
        %v529 = vpop.f32.mrf.mxu0
        %v530 = vadd.f32 %v418, %v529
        %531 = vmatmul.f32.gmra.mxu0 %v381
        %v532 = vpop.f32.mrf.mxu0
        %v533 = vadd.f32 %v423, %v532
        %534 = vmatmul.f32.gmra.mxu0 %v383
        %v535 = vpop.f32.mrf.mxu0
        %v536 = vadd.f32 %v428, %v535
        %537 = vmatmul.f32.gmra.mxu0 %v385
        %v538 = vpop.f32.mrf.mxu0
        %v539 = vadd.f32 %v433, %v538
        %540 = vmatmul.f32.gmra.mxu0 %v387
        %v541 = vpop.f32.mrf.mxu0
        %v542 = vadd.f32 %v438, %v541
        %543 = vmatmul.f32.gmra.mxu0 %v389
        %v544 = vpop.f32.mrf.mxu0
        %v545 = vadd.f32 %v443, %v544
        %546 = vmatmul.f32.gmra.mxu0 %v391
        %v547 = vpop.f32.mrf.mxu0
        %v548 = vadd.f32 %v448, %v547
        %549 = vmatmul.f32.gmra.mxu0 %v393
        %v550 = vpop.f32.mrf.mxu0
        %v551 = vadd.f32 %v453, %v550
        %552 = vmatmul.f32.gmra.mxu0 %v395
        %v553 = vpop.f32.mrf.mxu0
        %v554 = vadd.f32 %v458, %v553
        %555 = vmatmul.f32.gmra.mxu0 %v397
        %v556 = vpop.f32.mrf.mxu0
        %v557 = vadd.f32 %v463, %v556
        %558 = vmatmul.f32.gmra.mxu0 %v399
        %v559 = vpop.f32.mrf.mxu0
        %v560 = vadd.f32 %v468, %v559
        %561 = vmatmul.f32.gmra.mxu0 %v401
        %v562 = vpop.f32.mrf.mxu0
        %v563 = vadd.f32 %v473, %v562
        %564 = vdwg.mxu0
        %565 = vmatpush.msra.mxu0 0.0
        %566 = vmatpush.msra.mxu0 0.0
        %567 = vmatpush.msra.mxu0 0.0
        %568 = vmatpush.msra.mxu0 0.0
        %569 = vmatpush.msra.mxu0 0.0
        %570 = vmatpush.msra.mxu0 0.0
        %571 = vmatpush.msra.mxu0 0.0
        %572 = vmatpush.msra.mxu0 0.0
        %573 = vmatpush.msra.mxu0 %v377
        %574 = vmatpush.msra.mxu0 %v374
        %575 = vmatpush.msra.mxu0 %v371
        %576 = vmatpush.msra.mxu0 %v368
        %577 = vmatpush.msra.mxu0 %v365
        %578 = vmatpush.msra.mxu0 %v362
        %579 = vmatpush.msra.mxu0 %v359
        %580 = vmatpush.msra.mxu0 %v356
        %581 = vmatmul.f32.gmra.mxu0 %v477
        %v582 = vpop.f32.mrf.mxu0
        %v583 = vadd.f32 %v530, %v582
        %584 = vmatmul.f32.gmra.mxu0 %v480
        %v585 = vpop.f32.mrf.mxu0
        %v586 = vadd.f32 %v533, %v585
        %587 = vmatmul.f32.gmra.mxu0 %v483
        %v588 = vpop.f32.mrf.mxu0
        %v589 = vadd.f32 %v536, %v588
        %590 = vmatmul.f32.gmra.mxu0 %v486
        %v591 = vpop.f32.mrf.mxu0
        %v592 = vadd.f32 %v539, %v591
        %593 = vmatmul.f32.gmra.mxu0 %v489
        %v594 = vpop.f32.mrf.mxu0
        %v595 = vadd.f32 %v542, %v594
        %596 = vmatmul.f32.gmra.mxu0 %v492
        %v597 = vpop.f32.mrf.mxu0
        %v598 = vadd.f32 %v545, %v597
        %599 = vmatmul.f32.gmra.mxu0 %v495
        %v600 = vpop.f32.mrf.mxu0
        %v601 = vadd.f32 %v548, %v600
        %602 = vmatmul.f32.gmra.mxu0 %v498
        %v603 = vpop.f32.mrf.mxu0
        %v604 = vadd.f32 %v551, %v603
        %605 = vmatmul.f32.gmra.mxu0 %v501
        %v606 = vpop.f32.mrf.mxu0
        %v607 = vadd.f32 %v554, %v606
        %608 = vmatmul.f32.gmra.mxu0 %v504
        %v609 = vpop.f32.mrf.mxu0
        %v610 = vadd.f32 %v557, %v609
        %611 = vmatmul.f32.gmra.mxu0 %v507
        %v612 = vpop.f32.mrf.mxu0
        %v613 = vadd.f32 %v560, %v612
        %614 = vmatmul.f32.gmra.mxu0 %v510
        %v615 = vpop.f32.mrf.mxu0
        %v616 = vadd.f32 %v563, %v615
        %617 = vdwg.mxu0
        %vm618 = vcmask 261120
        %619 = vst.msk [vmem:[%s214] sm:$0xff] %vm618, %v583
        %620 = vst.msk [vmem:[%s214 + $0x8] sm:$0xff] %vm618, %v586
        %621 = vst.msk [vmem:[%s214 + $0x10] sm:$0xff] %vm618, %v589
        %622 = vst.msk [vmem:[%s214 + $0x18] sm:$0xff] %vm618, %v592
        %623 = vst.msk [vmem:[%s214 + $0x20] sm:$0xff] %vm618, %v595
        %624 = vst.msk [vmem:[%s214 + $0x28] sm:$0xff] %vm618, %v598
        %625 = vst.msk [vmem:[%s214 + $0x30] sm:$0xff] %vm618, %v601
        %626 = vst.msk [vmem:[%s214 + $0x38] sm:$0xff] %vm618, %v604
        %627 = vst.msk [vmem:[%s214 + $0x40] sm:$0xff] %vm618, %v607
        %628 = vst.msk [vmem:[%s214 + $0x48] sm:$0xff] %vm618, %v610
        %629 = vst.msk [vmem:[%s214 + $0x50] sm:$0xff] %vm618, %v613
        %630 = vst.msk [vmem:[%s214 + $0x58] sm:$0xff] %vm618, %v616
        %p631 = scmp.lt.s32.totalorder %s16, 1
        %s632 = scalar_select %p631, %s16, 1
        %s633 = smul.addr %s632, 12
        %s634 = smul.addr %s633, 8
        %s635 = scalar_lea.vmem %s4, %s634
        // Predicated region
        $region41: #{tpu_custom_call.1} parent=35 // pred_check
          %p636 = pneg %p123
        $region42: #{tpu_custom_call.1} parent=35 // pred_check_branch
          %638 = sbr.rel (%p636) target = $region44
        $region43: #{tpu_custom_call.1} parent=35 // pred_region
          _
        $region44: #{tpu_custom_call.1} parent=35 // pred_fallthru
          _
      $region36: #{tpu_custom_call.1} parent=5 // pred_fallthru
        _
      %p639 = scmp.le.s32.totalorder 2, %s11
      // Predicated region
      $region45: #{tpu_custom_call.1} parent=5 // pred_check
        %p640 = pneg %p639
      $region46: #{tpu_custom_call.1} parent=5 // pred_check_branch
        %642 = sbr.rel (%p640) target = $region48
      $region47: #{tpu_custom_call.1} parent=5 // pred_region
        %s643 = ssub.s32 %s11, 2
        // Predicated region
        $region49: #{tpu_custom_call.1} parent=47 // pred_check
          %p644 = pneg %p129
        $region50: #{tpu_custom_call.1} parent=47 // pred_check_branch
          %646 = sbr.rel (%p644) target = $region52
        $region51: #{tpu_custom_call.1} parent=47 // pred_region
          %p647 = scmp.lt.s32.totalorder %s17, 1
          %s648 = scalar_select %p647, %s17, 1
          %s649 = smul.addr %s648, 12
          %s650 = smul.addr %s649, 8
          %s651 = scalar_lea.vmem %s4, %s650
        $region52: #{tpu_custom_call.1} parent=47 // pred_fallthru
          _
      $region48: #{tpu_custom_call.1} parent=5 // pred_fallthru
        _
    $region6: #{tpu_custom_call.1} parent=1 // loop_footer
      %s15 = sadd.s32 1, %s11
    $region7: #{tpu_custom_call.1} parent=1 // loop_footer_branch
      %10 = sbr.rel target = $region3
    $region8: #{tpu_custom_call.1} parent=1 // loop_exit
      _
    %652 = vsyncpa [#allocation3], 1
    %s653 = scalar_lea.sflag [#allocation3], 1
    %654 = vsyncpa %s653, 1

</llo_original>
